<compile_context>
chip_gen: v6e
topology: v6e:2x2x1
jax: 0.10.0
libtpu: 0.0.40
codegen_flags: <defaults>
</compile_context>

<pallas_src>
import functools

import jax
import jax.numpy as jnp
from jax import lax
from jax.experimental import pallas as pl
from jax.experimental.pallas import tpu as pltpu

LANES = 128
_VMEM_LIMIT_BYTES = 32 * 1024 * 1024   # scoped VMEM cap; safe on v5e/v6e/v7x
_FUSED_VMEM_BUDGET = 24 * 1024 * 1024  # budget for the fused per-channel slab
_APPLY_CHUNK_BYTES = 16 * 1024 * 1024  # double-buffered in+out per apply block


# ----------------------------------------------------------------------------
# Kernels (rank-agnostic: blocks are (N,1,R,128) or (N,1,H,W))
# ----------------------------------------------------------------------------
def _adabn2d_train_kernel(params_ref, x_ref, o_ref, *, eps, inv_count):
    """One grid step per channel: fused batch stats + normalize + AdaBN mix.

    params_ref (SMEM, (3, C) f32): rows = [a, b*gamma, b*beta].
    """
    c = pl.program_id(0)
    a = params_ref[0, c]
    bg = params_ref[1, c]          # b * gamma_c
    bb = params_ref[2, c]          # b * beta_c

    xf = x_ref[...].astype(jnp.float32)

    # Single sweep: sum and sum-of-squares (biased variance, as BN forward).
    s1 = jnp.sum(xf)
    s2 = jnp.sum(xf * xf)
    mu = s1 * inv_count
    var = jnp.maximum(s2 * inv_count - mu * mu, 0.0)

    inv = lax.rsqrt(var + eps)
    # y = a*x + b*(gamma*(x-mu)*inv + beta)  ==  x*scale + shift
    scale = a + bg * inv
    shift = bb - bg * mu * inv
    o_ref[...] = (xf * scale + shift).astype(o_ref.dtype)


def _scale_shift_kernel(params_ref, x_ref, o_ref):
    """Pure per-channel x*scale + shift (eval mode / chunked fallback).

    params_ref (SMEM, (2, C) f32): rows = [scale, shift].
    """
    c = pl.program_id(0)
    scale = params_ref[0, c]
    shift = params_ref[1, c]
    o_ref[...] = (x_ref[...].astype(jnp.float32) * scale + shift).astype(o_ref.dtype)


# ----------------------------------------------------------------------------
# Helpers
# ----------------------------------------------------------------------------
def _pick_row_chunk(r, cap):
    """Largest divisor of r that is <= cap, preferring sublane-aligned (x8)."""
    cap = max(1, cap)
    if r <= cap:
        return r
    divs = [d for d in range(1, cap + 1) if r % d == 0]
    aligned = [d for d in divs if d % 8 == 0]
    return max(aligned) if aligned else max(divs)


# ----------------------------------------------------------------------------
# Wrapper
# ----------------------------------------------------------------------------
def adabn2d(x, params, *, training, eps=1e-5, max_fused_bytes=_FUSED_VMEM_BUDGET):
    """AdaBN2d forward.  x: (N, C, H, W) like PyTorch."""
    N, C, H, W = x.shape
    HW = H * W
    count = N * HW
    itemsize = jnp.dtype(x.dtype).itemsize

    lane_dense = (HW % LANES == 0)
    if lane_dense:
        R = HW // LANES
        x_k = x.reshape(N, C, R, LANES)     # contiguous reshape: no data movement
        full_block = (N, 1, R, LANES)
    else:
        R = None
        x_k = x                              # read NCHW directly
        full_block = (N, 1, H, W)            # last two dims == full array dims

    a = jnp.asarray(params["a"], jnp.float32)
    b = jnp.asarray(params["b"], jnp.float32)
    gamma = params["gamma"].astype(jnp.float32)
    beta = params["beta"].astype(jnp.float32)

    # ~6 bytes of VMEM buffering per element per channel in the fused path
    # (double-buffered in + out + f32 temps).
    fused_fits = count * 6 * max(itemsize, 4) <= max_fused_bytes

    if training and fused_fits:
        ptab = jnp.stack(
            [jnp.broadcast_to(a, (C,)), b * gamma, b * beta], axis=0)  # (3, C)
        kern = functools.partial(
            _adabn2d_train_kernel, eps=float(eps), inv_count=1.0 / count)
        out = pl.pallas_call(
            kern,
            out_shape=jax.ShapeDtypeStruct(x_k.shape, x.dtype),
            grid=(C,),
            in_specs=[
                pl.BlockSpec(memory_space=pltpu.MemorySpace.SMEM),
                pl.BlockSpec(full_block, lambda c: (0, c, 0, 0)),
            ],
            out_specs=pl.BlockSpec(full_block, lambda c: (0, c, 0, 0)),
            compiler_params=pltpu.CompilerParams(
                dimension_semantics=("parallel",),
                vmem_limit_bytes=_VMEM_LIMIT_BYTES),
        )(ptab, x_k)
        return out.reshape(N, C, H, W)

    # Scale/shift-folded path: eval mode, or training when a whole channel
    # does not fit the VMEM budget (stats then come from one XLA reduction).
    if training:
        mu = jnp.mean(x, axis=(0, 2, 3)).astype(jnp.float32)
        var = jnp.var(x, axis=(0, 2, 3)).astype(jnp.float32)  # biased, as BN fwd
    else:
        mu = params["running_mean"].astype(jnp.float32)
        var = params["running_var"].astype(jnp.float32)
    inv = lax.rsqrt(var + eps)
    bn_scale = b * gamma * inv
    scale = a + bn_scale
    shift = b * beta - bn_scale * mu
    ptab = jnp.stack(
        [jnp.broadcast_to(scale, (C,)), jnp.broadcast_to(shift, (C,))], axis=0)

    if lane_dense:
        max_tr = max(1, _APPLY_CHUNK_BYTES // (4 * N * LANES * max(itemsize, 4)))
        tr = _pick_row_chunk(R, max_tr)
        rc = R // tr
        block = (N, 1, tr, LANES)
        index_map = lambda c, r: (0, c, r, 0)
        grid = (C, rc)
        semantics = ("parallel", "parallel")   # fine-grained v7x megacore balance
    else:
        # TODO(synk): chunk H (or switch to manual DMA) if N*H*W per channel
        # ever exceeds the VMEM budget in the non-lane-dense layout.
        block = full_block
        index_map = lambda c: (0, c, 0, 0)
        grid = (C,)
        semantics = ("parallel",)

    out = pl.pallas_call(
        _scale_shift_kernel,
        out_shape=jax.ShapeDtypeStruct(x_k.shape, x.dtype),
        grid=grid,
        in_specs=[
            pl.BlockSpec(memory_space=pltpu.MemorySpace.SMEM),
            pl.BlockSpec(block, index_map),
        ],
        out_specs=pl.BlockSpec(block, index_map),
        compiler_params=pltpu.CompilerParams(
            dimension_semantics=semantics,
            vmem_limit_bytes=_VMEM_LIMIT_BYTES),
    )(ptab, x_k)
    return out.reshape(N, C, H, W)


# ----------------------------------------------------------------------------
# Pure-JAX reference (mirrors the PyTorch module) for in-script verification.
# ----------------------------------------------------------------------------
def adabn2d_ref(x, params, *, training, eps=1e-5):
    if training:
        mu = jnp.mean(x, axis=(0, 2, 3), keepdims=True)
        var = jnp.mean((x - mu) ** 2, axis=(0, 2, 3), keepdims=True)
    else:
        mu = params["running_mean"].reshape(1, -1, 1, 1)
        var = params["running_var"].reshape(1, -1, 1, 1)
    xhat = (x - mu) * lax.rsqrt(var + eps)
    bn = (params["gamma"].reshape(1, -1, 1, 1) * xhat
          + params["beta"].reshape(1, -1, 1, 1))
    return params["a"] * x + params["b"] * bn


def _check(name, y, ref, rtol=2e-4, atol=1e-4):
    assert y.shape == ref.shape, (name, y.shape, ref.shape)
    assert bool(jnp.all(jnp.isfinite(y))), name
    err = float(jnp.max(jnp.abs(y - ref)))
    assert bool(jnp.allclose(y, ref, rtol=rtol, atol=atol)), (name, err)


if __name__ == "__main__":
    # Small shapes consistent with the module: (N, C, H, W) = (2, 4, 16, 16).
    N, C, H, W = 2, 4, 16, 16

    key = jax.random.PRNGKey(0)
    kx, kg, kb, km, kv, kx2 = jax.random.split(key, 6)

    x = jax.random.normal(kx, (N, C, H, W), jnp.float32)
    params = {
        # a, b initialized exactly as in the PyTorch module.
        "a": jnp.float32(0.1),
        "b": jnp.float32(0.9),
        "gamma": 1.0 + 0.1 * jax.random.normal(kg, (C,), jnp.float32),
        "beta": 0.1 * jax.random.normal(kb, (C,), jnp.float32),
        "running_mean": 0.1 * jax.random.normal(km, (C,), jnp.float32),
        "running_var": 1.0 + 0.1 * jnp.abs(
            jax.random.normal(kv, (C,), jnp.float32)),
    }

    fwd_train = jax.jit(functools.partial(adabn2d, training=True))
    fwd_eval = jax.jit(functools.partial(adabn2d, training=False))
    # Force the VMEM-safe chunked training fallback (XLA stats + Pallas apply).
    fwd_train_chunked = jax.jit(
        functools.partial(adabn2d, training=True, max_fused_bytes=0))

    # Lane-dense path (H*W multiple of 128): fused training, eval, chunked.
    y_tr = jax.block_until_ready(fwd_train(x, params))
    y_ev = jax.block_until_ready(fwd_eval(x, params))
    y_tc = jax.block_until_ready(fwd_train_chunked(x, params))
    ref_tr = adabn2d_ref(x, params, training=True)
    ref_ev = adabn2d_ref(x, params, training=False)
    _check("train_fused", y_tr, ref_tr)
    _check("eval", y_ev, ref_ev)
    _check("train_chunked", y_tc, ref_tr)

    # Non-lane-dense fallback path (H*W not a multiple of 128): NCHW read
    # directly with (N, 1, H, W) blocks, no repack.
    x2 = jax.random.normal(kx2, (N, C, 5, 5), jnp.float32)
    y2_tr = jax.block_until_ready(fwd_train(x2, params))
    y2_ev = jax.block_until_ready(fwd_eval(x2, params))
    _check("train_fused_nchw", y2_tr, adabn2d_ref(x2, params, training=True))
    _check("eval_nchw", y2_ev, adabn2d_ref(x2, params, training=False))

    print("KERNEL_OK")
</pallas_src>

<mosaic_0001>
module attributes {stable_mosaic.version = 11 : i64} {
  func.func @_adabn2d_train_kernel(%arg0: i32, %arg1: memref<3x4xf32, #tpu.memory_space<smem>>, %arg2: memref<2x1x2x128xf32, #tpu.memory_space<vmem>>, %arg3: memref<2x1x2x128xf32, #tpu.memory_space<vmem>>) attributes {dimension_semantics = [#tpu.dimension_semantics<parallel>], iteration_bounds = array<i64: 4>, scalar_prefetch = 0 : i64, scratch_operands = 0 : i64, tpu.core_type = #tpu.core_type<tc>, window_params = [{transform_indices = @transform_0, window_bounds = array<i64: 3, 4>}, {transform_indices = @transform_1, window_bounds = array<i64: 2, 1, 2, 128>}, {transform_indices = @transform_2, window_bounds = array<i64: 2, 1, 2, 128>}]} {
    %c0 = arith.constant 0 : index
    %0 = arith.index_cast %arg0 : i32 to index
    %1 = memref.load %arg1[%c0, %0] : memref<3x4xf32, #tpu.memory_space<smem>>
    %c1 = arith.constant 1 : index
    %2 = arith.index_cast %arg0 : i32 to index
    %3 = memref.load %arg1[%c1, %2] : memref<3x4xf32, #tpu.memory_space<smem>>
    %c2 = arith.constant 2 : index
    %4 = arith.index_cast %arg0 : i32 to index
    %5 = memref.load %arg1[%c2, %4] : memref<3x4xf32, #tpu.memory_space<smem>>
    %c0_0 = arith.constant 0 : index
    %c0_1 = arith.constant 0 : index
    %c0_2 = arith.constant 0 : index
    %c0_3 = arith.constant 0 : index
    %6 = vector.load %arg2[%c0_0, %c0_1, %c0_2, %c0_3] : memref<2x1x2x128xf32, #tpu.memory_space<vmem>>, vector<2x1x2x128xf32>
    %7 = vector.shape_cast %6 : vector<2x1x2x128xf32> to vector<1x2x1x2x128xf32>
    %cst = arith.constant dense<0.000000e+00> : vector<1xf32>
    %8 = vector.multi_reduction <add>, %7, %cst [1, 2, 3, 4] : vector<1x2x1x2x128xf32> to vector<1xf32>
    %9 = vector.shape_cast %8 : vector<1xf32> to vector<1x1x1x1x1xf32>
    %10 = vector.extract %9[0, 0, 0, 0, 0] : f32 from vector<1x1x1x1x1xf32>
    %11 = arith.mulf %6, %6 : vector<2x1x2x128xf32>
    %12 = vector.shape_cast %11 : vector<2x1x2x128xf32> to vector<1x2x1x2x128xf32>
    %cst_4 = arith.constant dense<0.000000e+00> : vector<1xf32>
    %13 = vector.multi_reduction <add>, %12, %cst_4 [1, 2, 3, 4] : vector<1x2x1x2x128xf32> to vector<1xf32>
    %14 = vector.shape_cast %13 : vector<1xf32> to vector<1x1x1x1x1xf32>
    %15 = vector.extract %14[0, 0, 0, 0, 0] : f32 from vector<1x1x1x1x1xf32>
    %cst_5 = arith.constant 0.001953125 : f32
    %16 = arith.mulf %10, %cst_5 : f32
    %cst_6 = arith.constant 0.001953125 : f32
    %17 = arith.mulf %15, %cst_6 : f32
    %18 = arith.mulf %16, %16 : f32
    %19 = arith.subf %17, %18 : f32
    %cst_7 = arith.constant 0.000000e+00 : f32
    %20 = arith.maximumf %19, %cst_7 : f32
    %cst_8 = arith.constant 9.99999974E-6 : f32
    %21 = arith.addf %20, %cst_8 : f32
    %22 = math.rsqrt %21 : f32
    %23 = arith.mulf %3, %22 : f32
    %24 = arith.addf %1, %23 : f32
    %25 = arith.mulf %3, %16 : f32
    %26 = arith.mulf %25, %22 : f32
    %27 = arith.subf %5, %26 : f32
    %28 = vector.broadcast %24 : f32 to vector<2x1x2x128xf32>
    %29 = arith.mulf %6, %28 : vector<2x1x2x128xf32>
    %30 = vector.broadcast %27 : f32 to vector<2x1x2x128xf32>
    %31 = arith.addf %29, %30 : vector<2x1x2x128xf32>
    %c0_9 = arith.constant 0 : index
    %c0_10 = arith.constant 0 : index
    %c0_11 = arith.constant 0 : index
    %c0_12 = arith.constant 0 : index
    %32 = vector.load %arg3[%c0_9, %c0_10, %c0_11, %c0_12] : memref<2x1x2x128xf32, #tpu.memory_space<vmem>>, vector<2x1x2x128xf32>
    tpu.vector_store %arg3[%c0_9, %c0_10, %c0_11, %c0_12], %31 {strides = array<i32>} : memref<2x1x2x128xf32, #tpu.memory_space<vmem>>, vector<2x1x2x128xf32>,
    return
  }
  func.func @transform_0(%arg0: i32) -> (i32, i32) {
    %c0_i32 = arith.constant 0 : i32
    %c0_i32_0 = arith.constant 0 : i32
    %c0_i32_1 = arith.constant 0 : i32
    return %c0_i32, %c0_i32_0 : i32, i32
  }
  func.func @transform_1(%arg0: i32) -> (i32, i32, i32, i32) {
    %c0_i32 = arith.constant 0 : i32
    %c0_i32_0 = arith.constant 0 : i32
    %c0_i32_1 = arith.constant 0 : i32
    %c0_i32_2 = arith.constant 0 : i32
    return %c0_i32, %arg0, %c0_i32_0, %c0_i32_1 : i32, i32, i32, i32
  }
  func.func @transform_2(%arg0: i32) -> (i32, i32, i32, i32) {
    %c0_i32 = arith.constant 0 : i32
    %c0_i32_0 = arith.constant 0 : i32
    %c0_i32_1 = arith.constant 0 : i32
    %c0_i32_2 = arith.constant 0 : i32
    return %c0_i32, %arg0, %c0_i32_0, %c0_i32_1 : i32, i32, i32, i32
  }
}

</mosaic_0001>

<llo_original>
// kernel: adabn2d.1
$region0: #{adabn2d.1}
  #allocation0 [shape = 'u32[]', space=smem, size = 0x4, offset = 0x4, fixed_abs, tag = 'smem constant byte address 0x4 - core index']
  #allocation1 [shape = 'u32[144,128]{1,0:T(1,128)}', space=vmem, size = 0x12000, scoped, tag = 'internal scratch']
  %s0 = inlined_call_operand.vmem [shape: f32[3,4], index: 0, kind: input, shape index: {}]
  %s1 = inlined_call_operand.vmem [shape: f32[2,4,2,128], index: 1, kind: input, shape index: {}]
  %s2 = inlined_call_operand.vmem [shape: f32[2,4,2,128], index: 2, kind: output, shape index: {}]
  %s3 = sld [smem:[#allocation0]]
  $region109: #{adabn2d.1} parent=0
    _
  %s5 = ssub.s32 1, %s3
  %s6 = scalar_select 0, %s5, %s3
  $region1: #{adabn2d.1} parent=0
    #allocation2 [shape = 'u8[2048]{0}', space=smem, size = 0x800, scoped, tag = 'input window, operand 0, single buffered']
    #allocation3 [shape = 's32[2]{0}', space=sflag, size = 0x8, scoped, tag = 'scoped memory for adabn2d.1']
    #allocation4 [shape = 'u8[4096]{0}', space=vmem, size = 0x1000, scoped, tag = 'input window, operand 1']
    #allocation5 [shape = 'u8[4096]{0}', space=vmem, size = 0x1000, scoped, tag = 'output window, operand 0']
    %7 = vsyncpa [#allocation3], 0
    loop: start=0, step=1, limit=6
    $region2: #{adabn2d.1} parent=1 // loop_pre_header
      _
    $region3: #{adabn2d.1} parent=1 // loop_header
      %s9 = sphi 0, %s13
      %p10 = scmp.ge.s32.totalorder %s9, 6
      %s17 = sphi 0, %s17
      %s19 = sphi 0, %s17
      %s20 = sphi 0, %s19
      %s34 = sphi 0, %s20
      %s40 = sphi 0, %s42
      %s43 = sphi 0, %s40
      %s44 = sphi 0, %s43
      %s60 = sphi 0, %s44
      %s66 = sphi 0, %s68
      %s69 = sphi 0, %s66
      %s70 = sphi 0, %s69
      %s86 = sphi 0, %s70
    $region4: #{adabn2d.1} parent=1 // loop_header_branch
      %12 = sbr.rel (%p10) target = $region8
    $region5: #{adabn2d.1} parent=1 // loop_body
      %s14 = ssub.s32 %s9, 1
      %s15 = ssub.s32 %s9, 2
      %s16 = sadd.s32 %s9, 1
      %s18 = sadd.s32 %s17, 1
      %p21 = scmp.eq.s32.totalorder %s9, 3
      %p22 = scmp.ne.s32.totalorder %s17, %s19
      %p23 = scmp.eq.s32.totalorder %s9, 0
      %p24 = por %p22, %p23
      %p25 = scmp.ne.s32.totalorder %s17, %s19
      %p26 = scmp.eq.s32.totalorder %s14, 3
      %p27 = por %p25, %p26
      %p28 = scmp.ne.s32.totalorder %s19, %s20
      %p29 = scmp.eq.s32.totalorder %s14, 0
      %p30 = por %p28, %p29
      %p31 = scmp.ne.s32.totalorder %s19, %s20
      %p32 = scmp.eq.s32.totalorder %s15, 3
      %p33 = por %p31, %p32
      %p35 = scmp.ne.s32.totalorder %s20, %s34
      %p36 = scmp.eq.s32.totalorder %s15, 0
      %p37 = por %p35, %p36
      %s38 = ssub.s32 %s9, %s16
      %p39 = scmp.eq.s32.totalorder %s38, 0
      %s41 = sadd.s32 %s40, 1
      %s42 = scalar_select %p39, %s40, %s41
      %p45 = pneg %p39
      %p46 = scmp.eq.s32.totalorder %s9, 3
      %p47 = por %p45, %p46
      %p48 = scmp.ne.s32.totalorder %s40, %s43
      %p49 = scmp.eq.s32.totalorder %s9, 0
      %p50 = por %p48, %p49
      %p51 = scmp.ne.s32.totalorder %s40, %s43
      %p52 = scmp.eq.s32.totalorder %s14, 3
      %p53 = por %p51, %p52
      %p54 = scmp.ne.s32.totalorder %s43, %s44
      %p55 = scmp.eq.s32.totalorder %s14, 0
      %p56 = por %p54, %p55
      %p57 = scmp.ne.s32.totalorder %s43, %s44
      %p58 = scmp.eq.s32.totalorder %s15, 3
      %p59 = por %p57, %p58
      %p61 = scmp.ne.s32.totalorder %s44, %s60
      %p62 = scmp.eq.s32.totalorder %s15, 0
      %p63 = por %p61, %p62
      %s64 = ssub.s32 %s9, %s16
      %p65 = scmp.eq.s32.totalorder %s64, 0
      %s67 = sadd.s32 %s66, 1
      %s68 = scalar_select %p65, %s66, %s67
      %p71 = pneg %p65
      %p72 = scmp.eq.s32.totalorder %s9, 3
      %p73 = por %p71, %p72
      %p74 = scmp.ne.s32.totalorder %s66, %s69
      %p75 = scmp.eq.s32.totalorder %s9, 0
      %p76 = por %p74, %p75
      %p77 = scmp.ne.s32.totalorder %s66, %s69
      %p78 = scmp.eq.s32.totalorder %s14, 3
      %p79 = por %p77, %p78
      %p80 = scmp.ne.s32.totalorder %s69, %s70
      %p81 = scmp.eq.s32.totalorder %s14, 0
      %p82 = por %p80, %p81
      %p83 = scmp.ne.s32.totalorder %s69, %s70
      %p84 = scmp.eq.s32.totalorder %s15, 3
      %p85 = por %p83, %p84
      %p87 = scmp.ne.s32.totalorder %s70, %s86
      %p88 = scmp.eq.s32.totalorder %s15, 0
      %p89 = por %p87, %p88
      %p90 = scmp.le.s32.totalorder 1, %s9
      %p91 = scmp.lt.s32.totalorder %s9, 5
      %p92 = pnand %p90, %p91
      %p93 = pneg %p92
      // Predicated region
      $region9: #{adabn2d.1} parent=5 // pred_check
        _
      $region10: #{adabn2d.1} parent=5 // pred_check_branch
        %95 = sbr.rel (%p92) target = $region12
      $region11: #{adabn2d.1} parent=5 // pred_region
        %s96 = ssub.s32 %s9, 1
        // Predicated region
        $region13: #{adabn2d.1} parent=11 // pred_check
          %p97 = pneg %p30
        $region14: #{adabn2d.1} parent=11 // pred_check_branch
          %99 = sbr.rel (%p97) target = $region16
        $region15: #{adabn2d.1} parent=11 // pred_region
          %s101 = ssub.s32 64, 64
          %102 = vsyncadd [#allocation3], %s101
          %s104 = sshll.u32 %s0, 4
          %s105 = int_to_ptr.vmem [resolvable:$true] %s104
          %107 = dma.vmem_to_smem %s105, 64, [#allocation2], [#allocation3]
        $region16: #{adabn2d.1} parent=11 // pred_fallthru
          _
      $region12: #{adabn2d.1} parent=5 // pred_fallthru
        _
      %p108 = scmp.lt.s32.totalorder %s9, 4
      // Predicated region
      $region17: #{adabn2d.1} parent=5 // pred_check
        %p109 = pneg %p108
      $region18: #{adabn2d.1} parent=5 // pred_check_branch
        %111 = sbr.rel (%p109) target = $region20
      $region19: #{adabn2d.1} parent=5 // pred_region
        // Predicated region
        $region21: #{adabn2d.1} parent=19 // pred_check
          %p112 = pneg %p50
        $region22: #{adabn2d.1} parent=19 // pred_check_branch
          %114 = sbr.rel (%p112) target = $region24
        $region23: #{adabn2d.1} parent=19 // pred_region
          %s115 = sand.u32 %s40, 1
          %s116 = sand.u32 %s40, 1
          %s117 = smul.addr %s116, 4
          %s118 = scalar_lea.vmem [#allocation4], %s117
          %s119 = smul.addr %s9, 2
          %s120 = scalar_lea.vmem %s1, %s119
          // Predicated region
          $region25: #{adabn2d.1} parent=23 // pred_check
            _
          $region26: #{adabn2d.1} parent=23 // pred_check_branch
            %122 = sbr.rel (0) target = $region28
          $region27: #{adabn2d.1} parent=23 // pred_region
            // Predicated region
            $region29: #{adabn2d.1} parent=27 // pred_check
              _
            $region30: #{adabn2d.1} parent=27 // pred_check_branch
              %124 = sbr.rel target = $region32
            $region31: #{adabn2d.1} parent=27 // pred_region
              // Predicated region
              $region44: #{adabn2d.1} parent=31 // pred_check
                _
              $region45: #{adabn2d.1} parent=31 // pred_check_branch
                %142 = sbr.rel (0) target = $region47
              $region46: #{adabn2d.1} parent=31 // pred_region
                %s144 = ssub.s32 4, 1
                loop: start=0, step=1, limit=1
                $region48: #{adabn2d.1} parent=46 // loop_pre_header
                  _
                $region49: #{adabn2d.1} parent=46 // loop_header
                  %s146 = sphi 0, %s150
                  %p147 = scmp.ge.s32.totalorder %s146, 1
                  %s151 = sphi %s120, %s120
                  %s152 = sphi %s118, %s118
                $region50: #{adabn2d.1} parent=46 // loop_header_branch
                  %149 = sbr.rel (%p147) target = $region54
                $region51: #{adabn2d.1} parent=46 // loop_body
                  %v153 = vld [vmem:[%s151] sm:%s144]
                  %154 = vst [vmem:[%s152] sm:%s144] %v153
                  %v155 = vld [vmem:[%s151 + $0x8] sm:%s144]
                  %156 = vst [vmem:[%s152 + $0x2] sm:%s144] %v155
                $region52: #{adabn2d.1} parent=46 // loop_footer
                  %s150 = sadd.s32 1, %s146
                $region53: #{adabn2d.1} parent=46 // loop_footer_branch
                  %145 = sbr.rel target = $region49
                $region54: #{adabn2d.1} parent=46 // loop_exit
                  _
              $region47: #{adabn2d.1} parent=31 // pred_fallthru
                _
            $region32: #{adabn2d.1} parent=27 // pred_fallthru
              _
            // Predicated region
            $region33: #{adabn2d.1} parent=27 // pred_check
              _
            $region34: #{adabn2d.1} parent=27 // pred_check_branch
              %126 = sbr.rel (0) target = $region36
            $region35: #{adabn2d.1} parent=27 // pred_region
              %s128 = ssub.s32 4, 1
              loop: start=0, step=1, limit=1
              $region37: #{adabn2d.1} parent=35 // loop_pre_header
                _
              $region38: #{adabn2d.1} parent=35 // loop_header
                %s130 = sphi 0, %s134
                %p131 = scmp.ge.s32.totalorder %s130, 1
                %s135 = sphi %s120, %s120
                %s136 = sphi %s118, %s118
              $region39: #{adabn2d.1} parent=35 // loop_header_branch
                %133 = sbr.rel (%p131) target = $region43
              $region40: #{adabn2d.1} parent=35 // loop_body
                %v137 = vld [vmem:[%s135] sm:%s128]
                %138 = vst [vmem:[%s136] sm:%s128] %v137
                %v139 = vld [vmem:[%s135 + $0x8] sm:%s128]
                %140 = vst [vmem:[%s136 + $0x2] sm:%s128] %v139
              $region41: #{adabn2d.1} parent=35 // loop_footer
                %s134 = sadd.s32 1, %s130
              $region42: #{adabn2d.1} parent=35 // loop_footer_branch
                %129 = sbr.rel target = $region38
              $region43: #{adabn2d.1} parent=35 // loop_exit
                _
            $region36: #{adabn2d.1} parent=27 // pred_fallthru
              _
          $region28: #{adabn2d.1} parent=23 // pred_fallthru
            _
          %157 = vnop
        $region24: #{adabn2d.1} parent=19 // pred_fallthru
          _
      $region20: #{adabn2d.1} parent=5 // pred_fallthru
        _
      %p158 = scmp.le.s32.totalorder 1, %s9
      %p159 = scmp.lt.s32.totalorder %s9, 5
      %p160 = pnand %p158, %p159
      %p161 = pneg %p160
      // Predicated region
      $region55: #{adabn2d.1} parent=5 // pred_check
        _
      $region56: #{adabn2d.1} parent=5 // pred_check_branch
        %163 = sbr.rel (%p160) target = $region58
      $region57: #{adabn2d.1} parent=5 // pred_region
        %s164 = ssub.s32 %s9, 1
        // Predicated region
        $region59: #{adabn2d.1} parent=57 // pred_check
          %p165 = pneg %p30
        $region60: #{adabn2d.1} parent=57 // pred_check_branch
          %167 = sbr.rel (%p165) target = $region62
        $region61: #{adabn2d.1} parent=57 // pred_region
          %168 = dma.done [#allocation3], 64
        $region62: #{adabn2d.1} parent=57 // pred_fallthru
          _
        %s169 = sand.u32 %s43, 1
        %s170 = sand.u32 %s43, 1
        %s171 = smul.addr %s170, 4
        %s172 = scalar_lea.vmem [#allocation4], %s171
        // Predicated region
        $region63: #{adabn2d.1} parent=57 // pred_check
          %p173 = pneg %p56
        $region64: #{adabn2d.1} parent=57 // pred_check_branch
          %175 = sbr.rel (%p173) target = $region66
        $region65: #{adabn2d.1} parent=57 // pred_region
          _
        $region66: #{adabn2d.1} parent=57 // pred_fallthru
          _
        %176 = sfence
        %p177 = pneg %p30
        %p178 = pneg %p27
        %s179 = sand.u32 %s43, 1
        %s180 = sand.u32 %s43, 1
        %s181 = smul.addr %s180, 4
        %s182 = scalar_lea.vmem [#allocation4], %s181
        %p183 = pneg %p56
        %p184 = pneg %p53
        %p185 = pneg %p82
        %p186 = pneg %p79
        %s187 = sand.u32 %s69, 1
        %s188 = sand.u32 %s69, 1
        %s189 = smul.addr %s188, 4
        %s190 = scalar_lea.vmem [#allocation5], %s189
        %s191 = sld [smem:[#allocation2 + %s14]]
        %s192 = sshra.s32 %s14, 7
        %s193 = sand.u32 %s14, 127
        %s194 = sadd.s32 %s192, 1
        %s195 = smul.u32 %s194, 128
        %s196 = sshra.s32 %s14, 7
        %s197 = sand.u32 %s14, 127
        %s198 = sadd.s32 %s195, %s197
        %s199 = sld [smem:[#allocation2 + %s198]]
        %s200 = sadd.s32 %s192, 2
        %s201 = smul.u32 %s200, 128
        %s202 = sadd.s32 %s201, %s197
        %s203 = sld [smem:[#allocation2 + %s202]]
        %v204 = vld [vmem:[%s172] sm:$0x3]
        %v205 = vld [vmem:[%s172 + $0x2] sm:$0x3]
        %vm206 = vcmask 1041408
        %v207 = vsel %vm206, %v204, 0.0
        %v208 = vsel %vm206, %v205, 0.0
        %v209 = vadd.f32 %v207, %v208
        %210 = vadd.xlane.f32.xlu0 %v209
        %v211 = vpop.xlane.xlu0 %210
        %v212 = vrot.slane %v211, 4
        %v213 = vadd.f32 %v211, %v212
        %v214 = vrot.slane %v213, 2
        %v215 = vadd.f32 %v213, %v214
        %v216 = vrot.slane %v215, 1
        %v217 = vadd.f32 %v215, %v216
        %s218 = vtos %v217
        %v219 = vmul.f32 %v204, %v204
        %v220 = vmul.f32 %v205, %v205
        %v221 = vsel %vm206, %v219, 0.0
        %v222 = vsel %vm206, %v220, 0.0
        %v223 = vadd.f32 %v221, %v222
        %224 = vadd.xlane.f32.xlu0 %v223
        %v225 = vpop.xlane.xlu0 %224
        %v226 = vrot.slane %v225, 4
        %v227 = vadd.f32 %v225, %v226
        %v228 = vrot.slane %v227, 2
        %v229 = vadd.f32 %v227, %v228
        %v230 = vrot.slane %v229, 1
        %v231 = vadd.f32 %v229, %v230
        %s232 = vtos %v231
        %s233 = smul.f32 %s218, 0.001953125
        %s234 = smul.f32 %s232, 0.001953125
        %s235 = smul.f32 %s233, %s233
        %s236 = ssub.f32 %s234, %s235
        %s237 = smax.f32 %s236, 0.0
        %s238 = sadd.f32 %s237, 1e-05
        %v239 = vstv %s238
        %v240 = vrsqrt.pop %v239
        %s241 = vtos %v240
        %s242 = smul.f32 %s199, %s241
        %s243 = sadd.f32 %s191, %s242
        %s244 = smul.f32 %s199, %s233
        %s245 = smul.f32 %s244, %s241
        %s246 = ssub.f32 %s203, %s245
        %v247 = vstv %s243
        %v248 = vmul.f32 %v204, %v247
        %v249 = vmul.f32 %v205, %v247
        %v250 = vstv %s246
        %v251 = vadd.f32 %v248, %v250
        %v252 = vadd.f32 %v249, %v250
        %253 = vst [vmem:[%s190] sm:$0x3] %v251
        %254 = vst [vmem:[%s190 + $0x2] sm:$0x3] %v252
        %s255 = sand.u32 %s69, 1
        %s256 = sand.u32 %s69, 1
        %s257 = smul.addr %s256, 4
        %s258 = scalar_lea.vmem [#allocation5], %s257
        // Predicated region
        $region67: #{adabn2d.1} parent=57 // pred_check
          %p259 = pneg %p79
        $region68: #{adabn2d.1} parent=57 // pred_check_branch
          %261 = sbr.rel (%p259) target = $region70
        $region69: #{adabn2d.1} parent=57 // pred_region
          %s262 = smul.addr %s14, 2
          %s263 = scalar_lea.vmem %s2, %s262
          // Predicated region
          $region71: #{adabn2d.1} parent=69 // pred_check
            _
          $region72: #{adabn2d.1} parent=69 // pred_check_branch
            %265 = sbr.rel (0) target = $region74
          $region73: #{adabn2d.1} parent=69 // pred_region
            // Predicated region
            $region75: #{adabn2d.1} parent=73 // pred_check
              _
            $region76: #{adabn2d.1} parent=73 // pred_check_branch
              %267 = sbr.rel target = $region78
            $region77: #{adabn2d.1} parent=73 // pred_region
              // Predicated region
              $region90: #{adabn2d.1} parent=77 // pred_check
                _
              $region91: #{adabn2d.1} parent=77 // pred_check_branch
                %285 = sbr.rel (0) target = $region93
              $region92: #{adabn2d.1} parent=77 // pred_region
                %s287 = ssub.s32 4, 1
                loop: start=0, step=1, limit=1
                $region94: #{adabn2d.1} parent=92 // loop_pre_header
                  _
                $region95: #{adabn2d.1} parent=92 // loop_header
                  %s289 = sphi 0, %s293
                  %p290 = scmp.ge.s32.totalorder %s289, 1
                  %s294 = sphi %s258, %s258
                  %s295 = sphi %s263, %s263
                $region96: #{adabn2d.1} parent=92 // loop_header_branch
                  %292 = sbr.rel (%p290) target = $region100
                $region97: #{adabn2d.1} parent=92 // loop_body
                  %v296 = vld [vmem:[%s294] sm:%s287]
                  %297 = vst [vmem:[%s295] sm:%s287] %v296
                  %v298 = vld [vmem:[%s294 + $0x2] sm:%s287]
                  %299 = vst [vmem:[%s295 + $0x8] sm:%s287] %v298
                $region98: #{adabn2d.1} parent=92 // loop_footer
                  %s293 = sadd.s32 1, %s289
                $region99: #{adabn2d.1} parent=92 // loop_footer_branch
                  %288 = sbr.rel target = $region95
                $region100: #{adabn2d.1} parent=92 // loop_exit
                  _
              $region93: #{adabn2d.1} parent=77 // pred_fallthru
                _
            $region78: #{adabn2d.1} parent=73 // pred_fallthru
              _
            // Predicated region
            $region79: #{adabn2d.1} parent=73 // pred_check
              _
            $region80: #{adabn2d.1} parent=73 // pred_check_branch
              %269 = sbr.rel (0) target = $region82
            $region81: #{adabn2d.1} parent=73 // pred_region
              %s271 = ssub.s32 4, 1
              loop: start=0, step=1, limit=1
              $region83: #{adabn2d.1} parent=81 // loop_pre_header
                _
              $region84: #{adabn2d.1} parent=81 // loop_header
                %s273 = sphi 0, %s277
                %p274 = scmp.ge.s32.totalorder %s273, 1
                %s278 = sphi %s258, %s258
                %s279 = sphi %s263, %s263
              $region85: #{adabn2d.1} parent=81 // loop_header_branch
                %276 = sbr.rel (%p274) target = $region89
              $region86: #{adabn2d.1} parent=81 // loop_body
                %v280 = vld [vmem:[%s278] sm:%s271]
                %281 = vst [vmem:[%s279] sm:%s271] %v280
                %v282 = vld [vmem:[%s278 + $0x2] sm:%s271]
                %283 = vst [vmem:[%s279 + $0x8] sm:%s271] %v282
              $region87: #{adabn2d.1} parent=81 // loop_footer
                %s277 = sadd.s32 1, %s273
              $region88: #{adabn2d.1} parent=81 // loop_footer_branch
                %272 = sbr.rel target = $region84
              $region89: #{adabn2d.1} parent=81 // loop_exit
                _
            $region82: #{adabn2d.1} parent=73 // pred_fallthru
              _
          $region74: #{adabn2d.1} parent=69 // pred_fallthru
            _
          %300 = vnop
        $region70: #{adabn2d.1} parent=57 // pred_fallthru
          _
      $region58: #{adabn2d.1} parent=5 // pred_fallthru
        _
      %p301 = scmp.le.s32.totalorder 2, %s9
      // Predicated region
      $region101: #{adabn2d.1} parent=5 // pred_check
        %p302 = pneg %p301
      $region102: #{adabn2d.1} parent=5 // pred_check_branch
        %304 = sbr.rel (%p302) target = $region104
      $region103: #{adabn2d.1} parent=5 // pred_region
        %s305 = ssub.s32 %s9, 2
        // Predicated region
        $region105: #{adabn2d.1} parent=103 // pred_check
          %p306 = pneg %p85
        $region106: #{adabn2d.1} parent=103 // pred_check_branch
          %308 = sbr.rel (%p306) target = $region108
        $region107: #{adabn2d.1} parent=103 // pred_region
          %s309 = sand.u32 %s70, 1
          %s310 = sand.u32 %s70, 1
          %s311 = smul.addr %s310, 4
          %s312 = scalar_lea.vmem [#allocation5], %s311
        $region108: #{adabn2d.1} parent=103 // pred_fallthru
          _
      $region104: #{adabn2d.1} parent=5 // pred_fallthru
        _
    $region6: #{adabn2d.1} parent=1 // loop_footer
      %s13 = sadd.s32 1, %s9
    $region7: #{adabn2d.1} parent=1 // loop_footer_branch
      %8 = sbr.rel target = $region3
    $region8: #{adabn2d.1} parent=1 // loop_exit
      _
    %313 = vsyncpa [#allocation3], 1
    %s314 = scalar_lea.sflag [#allocation3], 1
    %315 = vsyncpa %s314, 1

</llo_original>
